<compile_context>
chip_gen: v5e
topology: v5e:2x2
jax: 0.10.0
libtpu: 0.0.40
codegen_flags: <defaults>
</compile_context>

<pallas_src>
import functools

import jax
import jax.numpy as jnp
from jax.experimental import pallas as pl
from jax.experimental.pallas import tpu as pltpu


def _our_loss_kernel(logits_ref, t_ref, d_ref, out_ref, *, n_total, tn):
    x = logits_ref[...].astype(jnp.float32)            # (TN, C+1) f32 compute
    rows, c1 = x.shape
    c = c1 - 1                                         # index of the extra class

    # numerically stable pieces of log_softmax (log_softmax never materialized)
    m = jnp.max(x, axis=1, keepdims=True)              # (TN, 1)
    z = x - m
    lse = jnp.log(jnp.sum(jnp.exp(z), axis=1, keepdims=True))   # (TN, 1)

    t = t_ref[...]                                     # (TN, 1) int32 targets
    d = d_ref[...]                                     # (TN, 1) f32 = delta_smooth[index]

    # z at the target column via iota-select + row reduce (exactly one hit/row)
    col = jax.lax.broadcasted_iota(jnp.int32, (rows, c1), 1)
    z_t = jnp.sum(jnp.where(col == t, z, 0.0), axis=1, keepdims=True)   # (TN, 1)
    z_c = z[:, c:c + 1]                                                 # extra class column

    # PyTorch one-hot: oh[t] = 1-d (overwritten when t == c), oh[:, -1] = d
    #   sum(log_softmax * oh) = coef_t * z_t + d * z_c - lse * sum(oh)
    is_c = t == c
    coef_t = jnp.where(is_c, 0.0, 1.0 - d)
    oh_sum = jnp.where(is_c, d, 1.0)
    per_row = coef_t * z_t + d * z_c - lse * oh_sum                     # (TN, 1)

    # zero out garbage rows of a ragged last tile (no host-side padding)
    row = jax.lax.broadcasted_iota(jnp.int32, (rows, 1), 0) + pl.program_id(0) * tn
    per_row = jnp.where(row < n_total, per_row, 0.0)

    partial = jnp.sum(per_row, axis=0, keepdims=True)                   # (1, 1)
    # (8,128)-aligned partial slab per tile -> unmasked lane-dense stores
    out_ref[...] = jnp.broadcast_to(partial[None, :, :], (1, 8, 128))


def our_loss(logits, targets, index, delta_smooth, *, block_rows=None):
    """Pallas implementation of OurLoss.forward (num_class = logits.shape[1]-1)."""
    n, c1 = logits.shape

    # glue: gather the per-sample smoothing coefficient (tiny table)
    d = delta_smooth[index].astype(jnp.float32).reshape(n, 1)
    t = targets.astype(jnp.int32).reshape(n, 1)

    # ---- row-tile selection --------------------------------------------------
    # budget ~2 MiB of f32 temporaries per logits tile (plus the double-buffered
    # input copies) -> well inside v7x's 64 MiB VMEM, big enough to amortize the
    # per-grid-step overhead.
    c1_pad = ((c1 + 127) // 128) * 128                 # lane dim pads to 128
    if block_rows is None:
        block_rows = (2 * 1024 * 1024) // (c1_pad * 4)
    tn = max(8, (int(block_rows) // 8) * 8)
    tn = min(tn, 2048)
    if n >= 8:
        tn = min(tn, (n // 8) * 8)                     # block never exceeds array rows
    else:
        tn = n                                         # block == full dim (allowed)

    g = pl.cdiv(n, tn)                                 # ragged last tile masked in-kernel

    kernel = functools.partial(_our_loss_kernel, n_total=n, tn=tn)

    itemsize = jnp.dtype(logits.dtype).itemsize
    cost = pl.CostEstimate(
        flops=8 * n * c1,
        transcendentals=n * c1 + n,
        bytes_accessed=n * c1 * itemsize + n * 8 + g * 8 * 128 * 4,
    )

    partials = pl.pallas_call(
        kernel,
        out_shape=jax.ShapeDtypeStruct((g, 8, 128), jnp.float32),
        grid=(g,),
        in_specs=[
            pl.BlockSpec((tn, c1), lambda i: (i, 0)),  # logits tile (original dtype)
            pl.BlockSpec((tn, 1), lambda i: (i, 0)),   # targets column
            pl.BlockSpec((tn, 1), lambda i: (i, 0)),   # delta column
        ],
        out_specs=pl.BlockSpec((1, 8, 128), lambda i: (i, 0, 0)),
        compiler_params=pltpu.CompilerParams(
            dimension_semantics=("parallel",),
            vmem_limit_bytes=48 * 1024 * 1024,
        ),
        cost_estimate=cost,
    )(logits, t, d)

    # finish the mean in JAX: divide by the *global* N, not the tile size
    return -jnp.sum(partials[:, 0, 0]) / jnp.float32(n)


def our_loss_ref(logits, targets, index, delta_smooth):
    """Pure-JAX reference mirroring the PyTorch semantics."""
    n, c1 = logits.shape
    c = c1 - 1
    d = delta_smooth[index].astype(jnp.float32)
    oh = jnp.zeros((n, c1), jnp.float32)
    oh = oh.at[jnp.arange(n), targets].set(1.0 - d)
    oh = oh.at[:, c].set(d)
    ls = jax.nn.log_softmax(logits.astype(jnp.float32), axis=1)
    return -jnp.mean(jnp.sum(ls * oh, axis=1))


if __name__ == "__main__":
    key = jax.random.PRNGKey(0)
    k1, k2, k3, k4 = jax.random.split(key, 4)

    # case 1: tiny f32 case (matches the module's toy usage)
    num_class, n, m = 4, 8, 16
    logits = jax.random.normal(k1, (n, num_class + 1), dtype=jnp.float32)
    targets = jax.random.randint(k2, (n,), 0, num_class + 1, dtype=jnp.int32)
    index = jax.random.randint(k3, (n,), 0, m, dtype=jnp.int32)
    delta_smooth = jax.random.uniform(k4, (m,), dtype=jnp.float32) * 0.2

    loss = our_loss(logits, targets, index, delta_smooth)
    jax.block_until_ready(loss)
    ref = our_loss_ref(logits, targets, index, delta_smooth)
    assert jnp.allclose(loss, ref, atol=1e-5, rtol=1e-5), (loss, ref)

    # case 2: bf16 logits, multi-tile grid with a ragged (masked) last tile
    num_class2, n2 = 10, 300
    k5, k6, k7, _ = jax.random.split(k4, 4)
    logits2 = jax.random.normal(k5, (n2, num_class2 + 1), dtype=jnp.bfloat16)
    targets2 = jax.random.randint(k6, (n2,), 0, num_class2 + 1, dtype=jnp.int32)
    index2 = jax.random.randint(k7, (n2,), 0, m, dtype=jnp.int32)

    loss2 = our_loss(logits2, targets2, index2, delta_smooth, block_rows=128)
    jax.block_until_ready(loss2)
    ref2 = our_loss_ref(logits2, targets2, index2, delta_smooth)
    assert jnp.allclose(loss2, ref2, atol=1e-4, rtol=1e-4), (loss2, ref2)

    # case 3: same bf16 inputs through the default (auto) tile-size path
    loss3 = our_loss(logits2, targets2, index2, delta_smooth)
    jax.block_until_ready(loss3)
    assert jnp.allclose(loss3, ref2, atol=1e-4, rtol=1e-4), (loss3, ref2)

    print("KERNEL_OK")
</pallas_src>

<mosaic_0001>
module attributes {stable_mosaic.version = 11 : i64} {
  func.func @_our_loss_kernel(%arg0: i32, %arg1: memref<8x5xf32, #tpu.memory_space<vmem>>, %arg2: memref<8x1xi32, #tpu.memory_space<vmem>>, %arg3: memref<8x1xf32, #tpu.memory_space<vmem>>, %arg4: memref<1x8x128xf32, #tpu.memory_space<vmem>>) attributes {dimension_semantics = [#tpu.dimension_semantics<parallel>], iteration_bounds = array<i64: 1>, scalar_prefetch = 0 : i64, scratch_operands = 0 : i64, tpu.core_type = #tpu.core_type<tc>, window_params = [{transform_indices = @transform_0, window_bounds = array<i64: 8, 5>}, {transform_indices = @transform_1, window_bounds = array<i64: 8, 1>}, {transform_indices = @transform_2, window_bounds = array<i64: 8, 1>}, {transform_indices = @transform_3, window_bounds = array<i64: 1, 8, 128>}]} {
    %c0 = arith.constant 0 : index
    %c0_0 = arith.constant 0 : index
    %0 = vector.load %arg1[%c0, %c0_0] : memref<8x5xf32, #tpu.memory_space<vmem>>, vector<8x5xf32>
    %cst = arith.constant dense<0xFF800000> : vector<8xf32>
    %1 = vector.multi_reduction <maximumf>, %0, %cst [1] : vector<8x5xf32> to vector<8xf32>
    %2 = vector.shape_cast %1 : vector<8xf32> to vector<8x1xf32>
    %3 = vector.broadcast %2 : vector<8x1xf32> to vector<8x5xf32>
    %4 = arith.subf %0, %3 : vector<8x5xf32>
    %5 = math.exp %4 : vector<8x5xf32>
    %cst_1 = arith.constant dense<0.000000e+00> : vector<8xf32>
    %6 = vector.multi_reduction <add>, %5, %cst_1 [1] : vector<8x5xf32> to vector<8xf32>
    %7 = vector.shape_cast %6 : vector<8xf32> to vector<8x1xf32>
    %8 = math.log %7 : vector<8x1xf32>
    %c0_2 = arith.constant 0 : index
    %c0_3 = arith.constant 0 : index
    %9 = vector.load %arg2[%c0_2, %c0_3] : memref<8x1xi32, #tpu.memory_space<vmem>>, vector<8x1xi32>
    %c0_4 = arith.constant 0 : index
    %c0_5 = arith.constant 0 : index
    %10 = vector.load %arg3[%c0_4, %c0_5] : memref<8x1xf32, #tpu.memory_space<vmem>>, vector<8x1xf32>
    %11 = tpu.iota {dimensions = array<i32: 1>} : vector<8x5xi32>
    %12 = vector.broadcast %9 : vector<8x1xi32> to vector<8x5xi32>
    %13 = arith.cmpi eq, %11, %12 : vector<8x5xi32>
    %cst_6 = arith.constant 0.000000e+00 : f32
    %14 = vector.broadcast %cst_6 : f32 to vector<8x5xf32>
    %15 = arith.select %13, %4, %14 : vector<8x5xi1>, vector<8x5xf32>
    %cst_7 = arith.constant dense<0.000000e+00> : vector<8xf32>
    %16 = vector.multi_reduction <add>, %15, %cst_7 [1] : vector<8x5xf32> to vector<8xf32>
    %17 = vector.shape_cast %16 : vector<8xf32> to vector<8x1xf32>
    %18 = vector.extract_strided_slice %4 {offsets = [0, 4], sizes = [8, 1], strides = [1, 1]} : vector<8x5xf32> to vector<8x1xf32>
    %c4_i32 = arith.constant 4 : i32
    %19 = vector.broadcast %c4_i32 : i32 to vector<8x1xi32>
    %20 = arith.cmpi eq, %9, %19 : vector<8x1xi32>
    %cst_8 = arith.constant 1.000000e+00 : f32
    %21 = vector.broadcast %cst_8 : f32 to vector<8x1xf32>
    %22 = arith.subf %21, %10 : vector<8x1xf32>
    %cst_9 = arith.constant 0.000000e+00 : f32
    %23 = vector.broadcast %cst_9 : f32 to vector<8x1xf32>
    %24 = arith.select %20, %23, %22 : vector<8x1xi1>, vector<8x1xf32>
    %cst_10 = arith.constant 1.000000e+00 : f32
    %25 = vector.broadcast %cst_10 : f32 to vector<8x1xf32>
    %26 = arith.select %20, %10, %25 : vector<8x1xi1>, vector<8x1xf32>
    %27 = arith.mulf %24, %17 : vector<8x1xf32>
    %28 = arith.mulf %10, %18 : vector<8x1xf32>
    %29 = arith.addf %27, %28 : vector<8x1xf32>
    %30 = arith.mulf %8, %26 : vector<8x1xf32>
    %31 = arith.subf %29, %30 : vector<8x1xf32>
    %32 = tpu.iota {dimensions = array<i32: 0>} : vector<8x1xi32>
    %c8_i32 = arith.constant 8 : i32
    %33 = arith.muli %arg0, %c8_i32 : i32
    %34 = vector.broadcast %33 : i32 to vector<8x1xi32>
    %35 = arith.addi %32, %34 : vector<8x1xi32>
    %c8_i32_11 = arith.constant 8 : i32
    %36 = vector.broadcast %c8_i32_11 : i32 to vector<8x1xi32>
    %37 = arith.cmpi slt, %35, %36 : vector<8x1xi32>
    %cst_12 = arith.constant 0.000000e+00 : f32
    %38 = vector.broadcast %cst_12 : f32 to vector<8x1xf32>
    %39 = arith.select %37, %31, %38 : vector<8x1xi1>, vector<8x1xf32>
    %cst_13 = arith.constant dense<0.000000e+00> : vector<1xf32>
    %40 = vector.multi_reduction <add>, %39, %cst_13 [0] : vector<8x1xf32> to vector<1xf32>
    %41 = vector.shape_cast %40 : vector<1xf32> to vector<1x1xf32>
    %42 = vector.shape_cast %41 : vector<1x1xf32> to vector<1x1x1xf32>
    %43 = vector.shape_cast %42 : vector<1x1x1xf32> to vector<1x1x1xf32>
    %44 = vector.broadcast %43 : vector<1x1x1xf32> to vector<1x8x128xf32>
    %c0_14 = arith.constant 0 : index
    %c0_15 = arith.constant 0 : index
    %c0_16 = arith.constant 0 : index
    %45 = vector.load %arg4[%c0_14, %c0_15, %c0_16] : memref<1x8x128xf32, #tpu.memory_space<vmem>>, vector<1x8x128xf32>
    tpu.vector_store %arg4[%c0_14, %c0_15, %c0_16], %44 {strides = array<i32>} : memref<1x8x128xf32, #tpu.memory_space<vmem>>, vector<1x8x128xf32>,
    return
  }
  func.func @transform_0(%arg0: i32) -> (i32, i32) {
    %c0_i32 = arith.constant 0 : i32
    %c0_i32_0 = arith.constant 0 : i32
    return %arg0, %c0_i32 : i32, i32
  }
  func.func @transform_1(%arg0: i32) -> (i32, i32) {
    %c0_i32 = arith.constant 0 : i32
    %c0_i32_0 = arith.constant 0 : i32
    return %arg0, %c0_i32 : i32, i32
  }
  func.func @transform_2(%arg0: i32) -> (i32, i32) {
    %c0_i32 = arith.constant 0 : i32
    %c0_i32_0 = arith.constant 0 : i32
    return %arg0, %c0_i32 : i32, i32
  }
  func.func @transform_3(%arg0: i32) -> (i32, i32, i32) {
    %c0_i32 = arith.constant 0 : i32
    %c0_i32_0 = arith.constant 0 : i32
    %c0_i32_1 = arith.constant 0 : i32
    return %arg0, %c0_i32, %c0_i32_0 : i32, i32, i32
  }
}

</mosaic_0001>

<llo_original>
// kernel: tpu_custom_call.1
$region0: #{tpu_custom_call.1}
  #allocation0 [shape = 'u32[]', space=smem, size = 0x4, offset = 0x4, fixed_abs, tag = 'smem constant byte address 0x4 - core index']
  #allocation1 [shape = 'u32[72,128]{1,0:T(1,128)}', space=vmem, size = 0x9000, scoped, tag = 'internal scratch']
  %s0 = inlined_call_operand.vmem [shape: f32[8,5], index: 0, kind: input, shape index: {}]
  %s1 = inlined_call_operand.vmem [shape: s32[8,1], index: 1, kind: input, shape index: {}]
  %s2 = inlined_call_operand.vmem [shape: f32[8,1], index: 2, kind: input, shape index: {}]
  %s3 = inlined_call_operand.hbm [shape: f32[1,8,128], index: 3, kind: output, shape index: {}]
  %s4 = sld [smem:[#allocation0]]
  $region22: #{tpu_custom_call.1} parent=0
    _
  %s6 = ssub.s32 1, %s4
  %s7 = scalar_select 0, %s6, %s4
  $region1: #{tpu_custom_call.1} parent=0
    #allocation2 [shape = 'u8[4096]{0}', space=vmem, size = 0x1000, scoped, tag = 'output window, operand 0, single buffered']
    #allocation3 [shape = 's32[1]{0}', space=sflag, size = 0x4, scoped, tag = 'scoped memory for tpu_custom_call.1']
    %8 = vsyncpa [#allocation3], 0
    // Predicated region
    $region2: #{tpu_custom_call.1} parent=1 // pred_check
      _
    $region3: #{tpu_custom_call.1} parent=1 // pred_check_branch
      %10 = sbr.rel (0) target = $region5
    $region4: #{tpu_custom_call.1} parent=1 // pred_region
      _
    $region5: #{tpu_custom_call.1} parent=1 // pred_fallthru
      _
    // Predicated region
    $region6: #{tpu_custom_call.1} parent=1 // pred_check
      _
    $region7: #{tpu_custom_call.1} parent=1 // pred_check_branch
      %12 = sbr.rel (0) target = $region9
    $region8: #{tpu_custom_call.1} parent=1 // pred_region
      _
    $region9: #{tpu_custom_call.1} parent=1 // pred_fallthru
      _
    // Predicated region
    $region10: #{tpu_custom_call.1} parent=1 // pred_check
      _
    $region11: #{tpu_custom_call.1} parent=1 // pred_check_branch
      %14 = sbr.rel (0) target = $region13
    $region12: #{tpu_custom_call.1} parent=1 // pred_region
      _
    $region13: #{tpu_custom_call.1} parent=1 // pred_fallthru
      _
    %v15 = vld [vmem:[%s0] sm:$0xff]
    %vm16 = vcmask 39936
    %v17 = vsel %vm16, %v15, -inf
    %18 = vmax.xlane.f32.xlu0 %v17
    %v19 = vpop.xlane.xlu0 %18
    %v20 = vsub.f32 %v15, %v19
    %v21 = vmul.f32 %v20, 1.442695
    %v22 = vpow.pop %v21
    %v23 = vsel %vm16, %v22, 0.0
    %24 = vadd.xlane.f32.xlu0 %v23
    %v25 = vpop.xlane.xlu0 %24
    %v26 = vlog2.pop %v25
    %v27 = vmul.f32 %v26, 0.6931472
    %v28 = vld [vmem:[%s1] sm:$0xff]
    %v29 = vld [vmem:[%s2] sm:$0xff]
    %v30 = vlaneseq
    %v31 = vand.u32 %v30, 127
    %32 = vset.pattern.permute.xlu0 0
    %33 = vperm.xlu0 %32, %v28
    %v34 = vpop.permute.xlu0 %33
    %vm35 = vcmp.eq.s32.totalorder %v31, %v34
    %v36 = vsel %vm35, %v20, 0.0
    %v37 = vsel %vm16, %v36, 0.0
    %38 = vadd.xlane.f32.xlu0 %v37
    %v39 = vpop.xlane.xlu0 %38
    %vm40 = vcmp.eq.s32.totalorder %v28, 4
    %v41 = vsub.f32 1.0, %v29
    %v42 = vsel %vm40, 0.0, %v41
    %v43 = vsel %vm40, %v29, 1.0
    %v44 = vmul.f32 %v42, %v39
    %46 = vrot.lane.b32.xlu0 %v20, 124
    %v47 = vpop.permute.xlu0 %46
    %v49 = vmul.f32 %v29, %v47
    %v50 = vadd.f32 %v44, %v49
    %v51 = vmul.f32 %v27, %v43
    %v52 = vsub.f32 %v50, %v51
    %v53 = vlaneseq
    %v54 = vshrl.u32 %v53, 7
    %s55 = smul.u32 0, 8
    %v56 = vstv %s55
    %v57 = vadd.s32 %v54, %v56
    %vm58 = vcmp.lt.s32.totalorder %v57, 8
    %v59 = vsel %vm58, %v52, 0.0
    %vm60 = vcmask 7168
    %v61 = vsel %vm60, %v59, 0.0
    %v62 = vrot.slane %v61, 4
    %v63 = vadd.f32 %v61, %v62
    %v64 = vrot.slane %v63, 2
    %v65 = vadd.f32 %v63, %v64
    %v66 = vrot.slane %v65, 1
    %v67 = vadd.f32 %v65, %v66
    %69 = vset.pattern.permute.xlu0 0
    %70 = vperm.xlu0 %69, %v67
    %v71 = vpop.permute.xlu0 %70
    %73 = vst [vmem:[#allocation2] sm:$0xff] %v71
    // Predicated region
    $region14: #{tpu_custom_call.1} parent=1 // pred_check
      _
    $region15: #{tpu_custom_call.1} parent=1 // pred_check_branch
      %75 = sbr.rel (0) target = $region17
    $region16: #{tpu_custom_call.1} parent=1 // pred_region
      %77 = vsyncadd [#allocation3], 0
      %s79 = sshll.u32 [#allocation2], 4
      %s80 = int_to_ptr.vmem [resolvable:$true] %s79
      %s81 = sshll.u32 %s3, 4
      %s82 = int_to_ptr.hbm [resolvable:$true] %s81
      %84 = dma.vmem_to_hbm [thread:$0]  %s80, 128, %s82, [#allocation3]
    $region17: #{tpu_custom_call.1} parent=1 // pred_fallthru
      _
    // Predicated region
    $region18: #{tpu_custom_call.1} parent=1 // pred_check
      _
    $region19: #{tpu_custom_call.1} parent=1 // pred_check_branch
      %86 = sbr.rel (0) target = $region21
    $region20: #{tpu_custom_call.1} parent=1 // pred_region
      %88 = dma.done [#allocation3], 128
    $region21: #{tpu_custom_call.1} parent=1 // pred_fallthru
      _
    %89 = vsyncpa [#allocation3], 1

</llo_original>
